<compile_context>
chip_gen: v5e
topology: v5e:2x2
jax: 0.10.0
libtpu: 0.0.40
codegen_flags: <defaults>
</compile_context>

<pallas_src>
import functools

import jax
import jax.numpy as jnp
from jax.experimental import pallas as pl
from jax.experimental.pallas import tpu as pltpu


# ---------------------------------------------------------------------------
# Fused one-pass kernel: pool + excite + scale for Bb batch rows per step.
# ---------------------------------------------------------------------------
def _se_fused_kernel(x_ref, w1t_ref, w2t_ref, o_ref, *, inv_hw):
    # x_ref: (Bb, C, HW)   w1t_ref: (C, Cr)   w2t_ref: (Cr, C)   o_ref: (Bb, C, HW)
    x = x_ref[...]

    # Squeeze: mean over the lane axis in f32 (last dim == full HW, no mask).
    pooled = jnp.sum(x.astype(jnp.float32), axis=-1) * inv_hw            # (Bb, C)

    # Excite: transpose-free row-form matmuls (weights pre-transposed on host).
    h = jnp.maximum(
        jnp.dot(pooled, w1t_ref[...].astype(jnp.float32),
                preferred_element_type=jnp.float32), 0.0)                # (Bb, Cr)
    z = jax.nn.sigmoid(
        jnp.dot(h, w2t_ref[...].astype(jnp.float32),
                preferred_element_type=jnp.float32))                     # (Bb, C)

    # Scale in f32, cast once at the store (lane-broadcast of the gate).
    o_ref[...] = (x.astype(jnp.float32) * z[:, :, None]).astype(o_ref.dtype)


# ---------------------------------------------------------------------------
# Two-pass fallback (large activations / tight VMEM, e.g. v7x).
# Pass 1: pool over HW tiles, excite fused into the last HW step -> (B, C, 1) gate.
# Pass 2: rescale x by the gate with HW tiling.
# ---------------------------------------------------------------------------
def _pool_excite_kernel(x_ref, w1_ref, w2_ref, gate_ref, *, hw, tile_hw, inv_hw):
    # x_ref: (C, tile_hw)  w1_ref: (Cr, C)  w2_ref: (C, Cr)  gate_ref: (C, 1) f32
    h_idx = pl.program_id(1)

    @pl.when(h_idx == 0)
    def _():
        gate_ref[...] = jnp.zeros_like(gate_ref)

    x = x_ref[...].astype(jnp.float32)
    # Mask the ragged tail tile (reads past HW are garbage when cdiv-tiled).
    col = jax.lax.broadcasted_iota(jnp.int32, x.shape, 1)
    x = jnp.where(col < (hw - h_idx * tile_hw), x, 0.0)
    gate_ref[...] += jnp.sum(x, axis=-1, keepdims=True)                  # (C, 1)

    @pl.when(h_idx == pl.num_programs(1) - 1)
    def _():
        pooled = gate_ref[...] * inv_hw                                  # (C, 1)
        hvec = jnp.maximum(
            jnp.dot(w1_ref[...].astype(jnp.float32), pooled,
                    preferred_element_type=jnp.float32), 0.0)            # (Cr, 1)
        gate_ref[...] = jax.nn.sigmoid(
            jnp.dot(w2_ref[...].astype(jnp.float32), hvec,
                    preferred_element_type=jnp.float32))                 # (C, 1)


def _scale_kernel(z_ref, x_ref, o_ref):
    # z_ref: (C, 1) f32   x_ref / o_ref: (C, tile_hw)
    # No tail mask needed: out-of-bounds lanes of the last tile are discarded
    # on writeback.
    o_ref[...] = (x_ref[...].astype(jnp.float32) * z_ref[...]).astype(o_ref.dtype)


# ---------------------------------------------------------------------------
# Helpers.
# ---------------------------------------------------------------------------
def _round_up(n, m):
    return ((n + m - 1) // m) * m


def _vmem_capacity_bytes():
    try:
        info = pltpu.get_tpu_info()
        for name in ("vmem_capacity_bytes", "vmem_bytes", "vmem_size_bytes"):
            cap = getattr(info, name, None)
            if cap:
                return int(cap)
    except Exception:
        pass
    return 128 << 20  # conservative default (v5e/v6e physical VMEM)


def _pick_hw_tile(hw, c, itemsize, budget_bytes):
    """Largest multiple-of-512 (else 128) lane tile fitting the budget (cdiv grid)."""
    hw_pad = _round_up(hw, 128)
    # dbl-buffered in + out (4x) plus allowance for two f32 in-kernel temps.
    per_lane = c * (4 * itemsize + 2 * 4)
    max_lanes = budget_bytes // max(per_lane, 1)
    if max_lanes >= 512:
        tile = min(int(max_lanes // 512) * 512, hw_pad)
    else:
        tile = min(max(128, int(max_lanes // 128) * 128), hw_pad)
    return hw if tile >= hw else tile


def _pick_batch_block(B, per_elem_vmem, slab_bytes, vmem_budget, w_bytes,
                      target_buffer_bytes=4 << 20):
    """Divisor of B: ~4 MiB per buffer, fits VMEM, >=2 grid steps when B>1."""
    cap = (vmem_budget - 2 * w_bytes - (2 << 20)) // max(per_elem_vmem, 1)
    bb = min(B, max(1, int(cap)),
             max(1, target_buffer_bytes // max(slab_bytes, 1)))
    if B > 1:
        bb = max(1, min(bb, B // 2))
    while B % bb:
        bb -= 1
    return max(1, bb)


# ---------------------------------------------------------------------------
# Wrapper.
# ---------------------------------------------------------------------------
def se_layer(x_nchw, w1, w2, *, two_pass=None):
    """SE layer forward.

    x_nchw: (B, C, H, W); w1: (C//r, C) [fc1.weight]; w2: (C, C//r) [fc2.weight].
    """
    B, C, H, W = x_nchw.shape
    HW = H * W
    Cr = w1.shape[0]
    itemsize = jnp.dtype(x_nchw.dtype).itemsize
    inv_hw = float(1.0 / HW)

    # Free metadata-only reshape: lane-dense spatial axis, channels on sublanes.
    x_flat = x_nchw.reshape(B, C, HW)

    w_bytes = (w1.size * jnp.dtype(w1.dtype).itemsize
               + w2.size * jnp.dtype(w2.dtype).itemsize)
    slab_bytes = C * HW * itemsize
    temp_bytes = 2 * C * HW * 4           # allowance for f32 in-kernel temporaries
    per_elem_vmem = 4 * slab_bytes + temp_bytes

    vmem_budget = int(0.85 * _vmem_capacity_bytes())      # ~108 MiB v5e/v6e, ~54 MiB v7x
    fused_one = per_elem_vmem + 2 * w_bytes + (2 << 20)

    if two_pass is None:
        two_pass = fused_one > vmem_budget
    # TODO(synk): on v7x with B==1 the fused grid has a single step (one of the
    # two TensorCores idles); a core-aware dispatch to the two-pass path (HW
    # axis shardable) would help batch-1 inference there.

    if not two_pass:
        # ------------------ fused one-pass (min HBM traffic) ------------------
        bb = _pick_batch_block(B, per_elem_vmem, slab_bytes, vmem_budget, w_bytes)
        w1t = jnp.transpose(w1)   # (C, Cr) — tiny, one-time
        w2t = jnp.transpose(w2)   # (Cr, C)

        out_flat = pl.pallas_call(
            functools.partial(_se_fused_kernel, inv_hw=inv_hw),
            out_shape=jax.ShapeDtypeStruct((B, C, HW), x_nchw.dtype),
            grid_spec=pltpu.PrefetchScalarGridSpec(
                num_scalar_prefetch=0,
                grid=(B // bb,),
                in_specs=[
                    pl.BlockSpec((bb, C, HW), lambda i: (i, 0, 0)),
                    pl.BlockSpec((C, Cr), lambda i: (0, 0)),
                    pl.BlockSpec((Cr, C), lambda i: (0, 0)),
                ],
                out_specs=pl.BlockSpec((bb, C, HW), lambda i: (i, 0, 0)),
            ),
            compiler_params=pltpu.CompilerParams(
                dimension_semantics=("parallel",),
                vmem_limit_bytes=vmem_budget,
            ),
        )(x_flat, w1t, w2t)
    else:
        # ------------------ two-pass fallback (VMEM-bounded) ------------------
        tile_budget = max(8 << 20, vmem_budget - 2 * w_bytes - (4 << 20))
        tile_hw = _pick_hw_tile(HW, C, itemsize, tile_budget)
        n_hw = pl.cdiv(HW, tile_hw)

        # Pass 1: pool over HW tiles with the excite folded into the last step.
        gate3 = pl.pallas_call(
            functools.partial(_pool_excite_kernel,
                              hw=HW, tile_hw=tile_hw, inv_hw=inv_hw),
            out_shape=jax.ShapeDtypeStruct((B, C, 1), jnp.float32),
            grid_spec=pltpu.PrefetchScalarGridSpec(
                num_scalar_prefetch=0,
                grid=(B, n_hw),
                in_specs=[
                    pl.BlockSpec((pl.Squeezed(), C, tile_hw), lambda b, h: (b, 0, h)),
                    pl.BlockSpec((Cr, C), lambda b, h: (0, 0)),
                    pl.BlockSpec((C, Cr), lambda b, h: (0, 0)),
                ],
                out_specs=pl.BlockSpec((pl.Squeezed(), C, 1), lambda b, h: (b, 0, 0)),
            ),
            compiler_params=pltpu.CompilerParams(
                dimension_semantics=("parallel", "arbitrary"),
                vmem_limit_bytes=vmem_budget,
            ),
        )(x_flat, w1, w2)

        # Pass 2: rescale with HW tiling; both axes independent.
        out_flat = pl.pallas_call(
            _scale_kernel,
            out_shape=jax.ShapeDtypeStruct((B, C, HW), x_nchw.dtype),
            grid_spec=pltpu.PrefetchScalarGridSpec(
                num_scalar_prefetch=0,
                grid=(B, n_hw),
                in_specs=[
                    pl.BlockSpec((pl.Squeezed(), C, 1), lambda b, h: (b, 0, 0)),
                    pl.BlockSpec((pl.Squeezed(), C, tile_hw), lambda b, h: (b, 0, h)),
                ],
                out_specs=pl.BlockSpec((pl.Squeezed(), C, tile_hw), lambda b, h: (b, 0, h)),
            ),
            compiler_params=pltpu.CompilerParams(
                dimension_semantics=("parallel", "parallel"),
                vmem_limit_bytes=vmem_budget,
            ),
        )(gate3, x_flat)

    return out_flat.reshape(B, C, H, W)


def se_layer_ref(x, w1, w2):
    # Pure-JAX reference matching the PyTorch module semantics.
    y = jnp.mean(x, axis=(2, 3))                 # (B, C)
    h = jnp.maximum(y @ w1.T, 0.0)               # (B, Cr)
    z = jax.nn.sigmoid(h @ w2.T)                 # (B, C)
    return x * z[:, :, None, None]


if __name__ == "__main__":
    B, C, H, W = 2, 4, 16, 16
    reduction = 4
    Cr = max(1, C // reduction)

    key = jax.random.PRNGKey(0)
    kx, k1, k2 = jax.random.split(key, 3)

    x = jax.random.normal(kx, (B, C, H, W), dtype=jnp.float32)
    # nn.Linear(channel, channel//reduction, bias=False).weight -> (C//r, C)
    w1 = jax.random.normal(k1, (Cr, C), dtype=jnp.float32) * 0.1
    # nn.Linear(channel//reduction, channel, bias=False).weight -> (C, C//r)
    w2 = jax.random.normal(k2, (C, Cr), dtype=jnp.float32) * 0.1

    ref = se_layer_ref(x, w1, w2)

    # Fused one-pass path.
    out = se_layer(x, w1, w2)
    jax.block_until_ready(out)
    assert jnp.allclose(out, ref, atol=1e-5, rtol=1e-5), "fused path mismatch"

    # Two-pass fallback path (exercised explicitly for coverage).
    out2 = se_layer(x, w1, w2, two_pass=True)
    jax.block_until_ready(out2)
    assert jnp.allclose(out2, ref, atol=1e-5, rtol=1e-5), "two-pass path mismatch"

    # Ragged spatial extent (HW=49, not a multiple of 128) — no pad/slice needed.
    x2 = jax.random.normal(kx, (2, 8, 7, 7), dtype=jnp.float32)
    w1b = jax.random.normal(k1, (2, 8), dtype=jnp.float32) * 0.1
    w2b = jax.random.normal(k2, (8, 2), dtype=jnp.float32) * 0.1
    ref2 = se_layer_ref(x2, w1b, w2b)

    o2 = se_layer(x2, w1b, w2b)
    jax.block_until_ready(o2)
    assert jnp.allclose(o2, ref2, atol=1e-5, rtol=1e-5), "fused ragged mismatch"

    o3 = se_layer(x2, w1b, w2b, two_pass=True)
    jax.block_until_ready(o3)
    assert jnp.allclose(o3, ref2, atol=1e-5, rtol=1e-5), "two-pass ragged mismatch"

    print("KERNEL_OK")
</pallas_src>

<mosaic_0001>
module attributes {stable_mosaic.version = 11 : i64} {
  func.func @_se_fused_kernel(%arg0: i32, %arg1: memref<1x4x256xf32, #tpu.memory_space<vmem>>, %arg2: memref<4x1xf32, #tpu.memory_space<vmem>>, %arg3: memref<1x4xf32, #tpu.memory_space<vmem>>, %arg4: memref<1x4x256xf32, #tpu.memory_space<vmem>>) attributes {dimension_semantics = [#tpu.dimension_semantics<parallel>], iteration_bounds = array<i64: 2>, scalar_prefetch = 0 : i64, scratch_operands = 0 : i64, tpu.core_type = #tpu.core_type<tc>, window_params = [{transform_indices = @transform_0, window_bounds = array<i64: 1, 4, 256>}, {pipeline_mode = #tpu.pipeline_mode<synchronous>, transform_indices = @transform_1, window_bounds = array<i64: 4, 1>}, {pipeline_mode = #tpu.pipeline_mode<synchronous>, transform_indices = @transform_2, window_bounds = array<i64: 1, 4>}, {transform_indices = @transform_3, window_bounds = array<i64: 1, 4, 256>}]} {
    %c0 = arith.constant 0 : index
    %c0_0 = arith.constant 0 : index
    %c0_1 = arith.constant 0 : index
    %0 = vector.load %arg1[%c0, %c0_0, %c0_1] : memref<1x4x256xf32, #tpu.memory_space<vmem>>, vector<1x4x256xf32>
    %cst = arith.constant dense<0.000000e+00> : vector<1x4xf32>
    %1 = vector.multi_reduction <add>, %0, %cst [2] : vector<1x4x256xf32> to vector<1x4xf32>
    %cst_2 = arith.constant 3.906250e-03 : f32
    %2 = vector.broadcast %cst_2 : f32 to vector<1x4xf32>
    %3 = arith.mulf %1, %2 : vector<1x4xf32>
    %c0_3 = arith.constant 0 : index
    %c0_4 = arith.constant 0 : index
    %4 = vector.load %arg2[%c0_3, %c0_4] : memref<4x1xf32, #tpu.memory_space<vmem>>, vector<4x1xf32>
    %cst_5 = arith.constant dense<0.000000e+00> : vector<1x1xf32>
    %5 = tpu.matmul %3, %4, %cst_5 {dimension_numbers = #tpu.dot_dimension_numbers<[1], [0], [0], [1], [0, 0, 1, 1], [], []>} : vector<1x4xf32>, vector<4x1xf32>, vector<1x1xf32> -> vector<1x1xf32>
    %cst_6 = arith.constant 0.000000e+00 : f32
    %6 = vector.broadcast %cst_6 : f32 to vector<1x1xf32>
    %7 = arith.maximumf %5, %6 : vector<1x1xf32>
    %c0_7 = arith.constant 0 : index
    %c0_8 = arith.constant 0 : index
    %8 = vector.load %arg3[%c0_7, %c0_8] : memref<1x4xf32, #tpu.memory_space<vmem>>, vector<1x4xf32>
    %cst_9 = arith.constant dense<0.000000e+00> : vector<1x4xf32>
    %9 = tpu.matmul %7, %8, %cst_9 {dimension_numbers = #tpu.dot_dimension_numbers<[1], [0], [0], [1], [0, 0, 1, 1], [], []>} : vector<1x1xf32>, vector<1x4xf32>, vector<1x4xf32> -> vector<1x4xf32>
    %10 = arith.negf %9 : vector<1x4xf32>
    %11 = math.exp %10 : vector<1x4xf32>
    %cst_10 = arith.constant 1.000000e+00 : f32
    %12 = vector.broadcast %cst_10 : f32 to vector<1x4xf32>
    %13 = arith.addf %12, %11 : vector<1x4xf32>
    %14 = arith.divf %12, %13 : vector<1x4xf32>
    %15 = vector.shape_cast %14 : vector<1x4xf32> to vector<1x4x1xf32>
    %16 = vector.broadcast %15 : vector<1x4x1xf32> to vector<1x4x256xf32>
    %17 = arith.mulf %0, %16 : vector<1x4x256xf32>
    %c0_11 = arith.constant 0 : index
    %c0_12 = arith.constant 0 : index
    %c0_13 = arith.constant 0 : index
    %18 = vector.load %arg4[%c0_11, %c0_12, %c0_13] : memref<1x4x256xf32, #tpu.memory_space<vmem>>, vector<1x4x256xf32>
    tpu.vector_store %arg4[%c0_11, %c0_12, %c0_13], %17 {strides = array<i32>} : memref<1x4x256xf32, #tpu.memory_space<vmem>>, vector<1x4x256xf32>,
    return
  }
  func.func @transform_0(%arg0: i32) -> (i32, i32, i32) {
    %c0_i32 = arith.constant 0 : i32
    %c0_i32_0 = arith.constant 0 : i32
    %c0_i32_1 = arith.constant 0 : i32
    return %arg0, %c0_i32, %c0_i32_0 : i32, i32, i32
  }
  func.func @transform_1(%arg0: i32) -> (i32, i32) {
    %c0_i32 = arith.constant 0 : i32
    %c0_i32_0 = arith.constant 0 : i32
    %c0_i32_1 = arith.constant 0 : i32
    return %c0_i32, %c0_i32_0 : i32, i32
  }
  func.func @transform_2(%arg0: i32) -> (i32, i32) {
    %c0_i32 = arith.constant 0 : i32
    %c0_i32_0 = arith.constant 0 : i32
    %c0_i32_1 = arith.constant 0 : i32
    return %c0_i32, %c0_i32_0 : i32, i32
  }
  func.func @transform_3(%arg0: i32) -> (i32, i32, i32) {
    %c0_i32 = arith.constant 0 : i32
    %c0_i32_0 = arith.constant 0 : i32
    %c0_i32_1 = arith.constant 0 : i32
    return %arg0, %c0_i32, %c0_i32_0 : i32, i32, i32
  }
}

</mosaic_0001>

<llo_original>
// kernel: tpu_custom_call.1
$region0: #{tpu_custom_call.1}
  #allocation0 [shape = 'u32[]', space=smem, size = 0x4, offset = 0x4, fixed_abs, tag = 'smem constant byte address 0x4 - core index']
  #allocation1 [shape = 'u32[72,128]{1,0:T(1,128)}', space=vmem, size = 0x9000, scoped, tag = 'internal scratch']
  %s0 = inlined_call_operand.hbm [shape: f32[2,4,256], index: 0, kind: input, shape index: {}]
  %s1 = inlined_call_operand.vmem [shape: f32[4,1], index: 1, kind: input, shape index: {}]
  %s2 = inlined_call_operand.vmem [shape: f32[1,4], index: 2, kind: input, shape index: {}]
  %s3 = inlined_call_operand.hbm [shape: f32[2,4,256], index: 3, kind: output, shape index: {}]
  %s4 = sld [smem:[#allocation0]]
  $region49: #{tpu_custom_call.1} parent=0
    _
  %s6 = ssub.s32 1, %s4
  %s7 = scalar_select 0, %s6, %s4
  $region1: #{tpu_custom_call.1} parent=0
    #allocation2 [shape = 'u8[8192]{0}', space=vmem, size = 0x2000, scoped, tag = 'input window, operand 0']
    #allocation3 [shape = 's32[2]{0}', space=sflag, size = 0x8, scoped, tag = 'scoped memory for tpu_custom_call.1']
    #allocation4 [shape = 's32[2]{0}', space=sflag, size = 0x8, scoped, tag = 'scoped memory for tpu_custom_call.1']
    #allocation5 [shape = 'u8[8192]{0}', space=vmem, size = 0x2000, scoped, tag = 'output window, operand 0']
    %8 = vsyncpa [#allocation3], 0
    %s9 = scalar_lea.sflag [#allocation3], 1
    %10 = vsyncpa %s9, 0
    %11 = vsyncpa [#allocation4], 0
    %s12 = scalar_lea.sflag [#allocation4], 1
    %13 = vsyncpa %s12, 0
    loop: start=0, step=1, limit=4
    $region2: #{tpu_custom_call.1} parent=1 // loop_pre_header
      _
    $region3: #{tpu_custom_call.1} parent=1 // loop_header
      %s15 = sphi 0, %s19
      %p16 = scmp.ge.s32.totalorder %s15, 4
      %s25 = sphi 0, %s27
      %s28 = sphi 0, %s25
      %s29 = sphi 0, %s28
      %s45 = sphi 0, %s29
      %s49 = sphi 0, %s49
      %s51 = sphi 0, %s49
      %s52 = sphi 0, %s51
      %s66 = sphi 0, %s52
      %s70 = sphi 0, %s70
      %s72 = sphi 0, %s70
      %s73 = sphi 0, %s72
      %s87 = sphi 0, %s73
      %s93 = sphi 0, %s95
      %s96 = sphi 0, %s93
      %s97 = sphi 0, %s96
      %s113 = sphi 0, %s97
    $region4: #{tpu_custom_call.1} parent=1 // loop_header_branch
      %18 = sbr.rel (%p16) target = $region8
    $region5: #{tpu_custom_call.1} parent=1 // loop_body
      %s20 = ssub.s32 %s15, 1
      %s21 = ssub.s32 %s15, 2
      %s22 = sadd.s32 %s15, 1
      %s23 = ssub.s32 %s15, %s22
      %p24 = scmp.eq.s32.totalorder %s23, 0
      %s26 = sadd.s32 %s25, 1
      %s27 = scalar_select %p24, %s25, %s26
      %p30 = pneg %p24
      %p31 = scmp.eq.s32.totalorder %s15, 1
      %p32 = por %p30, %p31
      %p33 = scmp.ne.s32.totalorder %s25, %s28
      %p34 = scmp.eq.s32.totalorder %s15, 0
      %p35 = por %p33, %p34
      %p36 = scmp.ne.s32.totalorder %s25, %s28
      %p37 = scmp.eq.s32.totalorder %s20, 1
      %p38 = por %p36, %p37
      %p39 = scmp.ne.s32.totalorder %s28, %s29
      %p40 = scmp.eq.s32.totalorder %s20, 0
      %p41 = por %p39, %p40
      %p42 = scmp.ne.s32.totalorder %s28, %s29
      %p43 = scmp.eq.s32.totalorder %s21, 1
      %p44 = por %p42, %p43
      %p46 = scmp.ne.s32.totalorder %s29, %s45
      %p47 = scmp.eq.s32.totalorder %s21, 0
      %p48 = por %p46, %p47
      %s50 = sadd.s32 %s49, 1
      %p53 = scmp.eq.s32.totalorder %s15, 1
      %p54 = scmp.ne.s32.totalorder %s49, %s51
      %p55 = scmp.eq.s32.totalorder %s15, 0
      %p56 = por %p54, %p55
      %p57 = scmp.ne.s32.totalorder %s49, %s51
      %p58 = scmp.eq.s32.totalorder %s20, 1
      %p59 = por %p57, %p58
      %p60 = scmp.ne.s32.totalorder %s51, %s52
      %p61 = scmp.eq.s32.totalorder %s20, 0
      %p62 = por %p60, %p61
      %p63 = scmp.ne.s32.totalorder %s51, %s52
      %p64 = scmp.eq.s32.totalorder %s21, 1
      %p65 = por %p63, %p64
      %p67 = scmp.ne.s32.totalorder %s52, %s66
      %p68 = scmp.eq.s32.totalorder %s21, 0
      %p69 = por %p67, %p68
      %s71 = sadd.s32 %s70, 1
      %p74 = scmp.eq.s32.totalorder %s15, 1
      %p75 = scmp.ne.s32.totalorder %s70, %s72
      %p76 = scmp.eq.s32.totalorder %s15, 0
      %p77 = por %p75, %p76
      %p78 = scmp.ne.s32.totalorder %s70, %s72
      %p79 = scmp.eq.s32.totalorder %s20, 1
      %p80 = por %p78, %p79
      %p81 = scmp.ne.s32.totalorder %s72, %s73
      %p82 = scmp.eq.s32.totalorder %s20, 0
      %p83 = por %p81, %p82
      %p84 = scmp.ne.s32.totalorder %s72, %s73
      %p85 = scmp.eq.s32.totalorder %s21, 1
      %p86 = por %p84, %p85
      %p88 = scmp.ne.s32.totalorder %s73, %s87
      %p89 = scmp.eq.s32.totalorder %s21, 0
      %p90 = por %p88, %p89
      %s91 = ssub.s32 %s15, %s22
      %p92 = scmp.eq.s32.totalorder %s91, 0
      %s94 = sadd.s32 %s93, 1
      %s95 = scalar_select %p92, %s93, %s94
      %p98 = pneg %p92
      %p99 = scmp.eq.s32.totalorder %s15, 1
      %p100 = por %p98, %p99
      %p101 = scmp.ne.s32.totalorder %s93, %s96
      %p102 = scmp.eq.s32.totalorder %s15, 0
      %p103 = por %p101, %p102
      %p104 = scmp.ne.s32.totalorder %s93, %s96
      %p105 = scmp.eq.s32.totalorder %s20, 1
      %p106 = por %p104, %p105
      %p107 = scmp.ne.s32.totalorder %s96, %s97
      %p108 = scmp.eq.s32.totalorder %s20, 0
      %p109 = por %p107, %p108
      %p110 = scmp.ne.s32.totalorder %s96, %s97
      %p111 = scmp.eq.s32.totalorder %s21, 1
      %p112 = por %p110, %p111
      %p114 = scmp.ne.s32.totalorder %s97, %s113
      %p115 = scmp.eq.s32.totalorder %s21, 0
      %p116 = por %p114, %p115
      %p117 = scmp.le.s32.totalorder 1, %s15
      %p118 = scmp.lt.s32.totalorder %s15, 3
      %p119 = pnand %p117, %p118
      %p120 = pneg %p119
      // Predicated region
      $region9: #{tpu_custom_call.1} parent=5 // pred_check
        _
      $region10: #{tpu_custom_call.1} parent=5 // pred_check_branch
        %122 = sbr.rel (%p119) target = $region12
      $region11: #{tpu_custom_call.1} parent=5 // pred_region
        %s123 = ssub.s32 %s15, 1
        // Predicated region
        $region13: #{tpu_custom_call.1} parent=11 // pred_check
          %p124 = pneg %p62
        $region14: #{tpu_custom_call.1} parent=11 // pred_check_branch
          %126 = sbr.rel (%p124) target = $region16
        $region15: #{tpu_custom_call.1} parent=11 // pred_region
          _
        $region16: #{tpu_custom_call.1} parent=11 // pred_fallthru
          _
        // Predicated region
        $region17: #{tpu_custom_call.1} parent=11 // pred_check
          %p127 = pneg %p83
        $region18: #{tpu_custom_call.1} parent=11 // pred_check_branch
          %129 = sbr.rel (%p127) target = $region20
        $region19: #{tpu_custom_call.1} parent=11 // pred_region
          _
        $region20: #{tpu_custom_call.1} parent=11 // pred_fallthru
          _
      $region12: #{tpu_custom_call.1} parent=5 // pred_fallthru
        _
      %p130 = scmp.lt.s32.totalorder %s15, 2
      // Predicated region
      $region21: #{tpu_custom_call.1} parent=5 // pred_check
        %p131 = pneg %p130
      $region22: #{tpu_custom_call.1} parent=5 // pred_check_branch
        %133 = sbr.rel (%p131) target = $region24
      $region23: #{tpu_custom_call.1} parent=5 // pred_region
        // Predicated region
        $region25: #{tpu_custom_call.1} parent=23 // pred_check
          %p134 = pneg %p35
        $region26: #{tpu_custom_call.1} parent=23 // pred_check_branch
          %136 = sbr.rel (%p134) target = $region28
        $region27: #{tpu_custom_call.1} parent=23 // pred_region
          %s137 = sand.u32 %s25, 1
          %s138 = scalar_lea.sflag [#allocation3], %s137
          %s139 = sand.u32 %s25, 1
          %s140 = smul.addr %s139, 8
          %s141 = scalar_lea.vmem [#allocation2], %s140
          %143 = vsyncadd %s138, 0
          %s144 = smul.addr %s15, 2
          %s145 = smul.addr %s144, 4
          %s146 = scalar_lea.hbm %s0, %s145
          %s148 = sshll.u32 %s146, 4
          %s149 = int_to_ptr.hbm [resolvable:$true] %s148
          %s150 = sshll.u32 %s141, 4
          %s151 = int_to_ptr.vmem [resolvable:$true] %s150
          %153 = dma.hbm_to_vmem [thread:$0]  %s149, 128, %s151, %s138
        $region28: #{tpu_custom_call.1} parent=23 // pred_fallthru
          _
      $region24: #{tpu_custom_call.1} parent=5 // pred_fallthru
        _
      %p154 = scmp.le.s32.totalorder 1, %s15
      %p155 = scmp.lt.s32.totalorder %s15, 3
      %p156 = pnand %p154, %p155
      %p157 = pneg %p156
      // Predicated region
      $region29: #{tpu_custom_call.1} parent=5 // pred_check
        _
      $region30: #{tpu_custom_call.1} parent=5 // pred_check_branch
        %159 = sbr.rel (%p156) target = $region32
      $region31: #{tpu_custom_call.1} parent=5 // pred_region
        %s160 = ssub.s32 %s15, 1
        %s161 = sand.u32 %s28, 1
        %s162 = scalar_lea.sflag [#allocation3], %s161
        %s163 = sand.u32 %s28, 1
        %s164 = smul.addr %s163, 8
        %s165 = scalar_lea.vmem [#allocation2], %s164
        // Predicated region
        $region33: #{tpu_custom_call.1} parent=31 // pred_check
          %p166 = pneg %p41
        $region34: #{tpu_custom_call.1} parent=31 // pred_check_branch
          %168 = sbr.rel (%p166) target = $region36
        $region35: #{tpu_custom_call.1} parent=31 // pred_region
          %170 = dma.done %s162, 128
        $region36: #{tpu_custom_call.1} parent=31 // pred_fallthru
          _
        %s171 = sand.u32 %s28, 1
        %s172 = scalar_lea.sflag [#allocation3], %s171
        %s173 = sand.u32 %s28, 1
        %s174 = smul.addr %s173, 8
        %s175 = scalar_lea.vmem [#allocation2], %s174
        %p176 = pneg %p41
        %p177 = pneg %p38
        %p178 = pneg %p62
        %p179 = pneg %p59
        %p180 = pneg %p83
        %p181 = pneg %p80
        %p182 = pneg %p109
        %p183 = pneg %p106
        %s184 = sand.u32 %s96, 1
        %s185 = scalar_lea.sflag [#allocation4], %s184
        %s186 = sand.u32 %s96, 1
        %s187 = smul.addr %s186, 8
        %s188 = scalar_lea.vmem [#allocation5], %s187
        %v189 = vld [vmem:[%s165] sm:$0xff]
        %191 = vst [vmem:[#allocation1] ss:$2 sm:$0xff] %v189
        %v192 = vld.sshfl [vmem:[#allocation1] sm:$0xff pattern:$0x75316420]
        %v193 = vld.sshfl [vmem:[#allocation1 + $0x8] sm:$0xff pattern:$0x75316420]
        %vm196 = vcmask 1043456
        %v197 = vsel %vm196, %v192, 0.0
        %v198 = vsel %vm196, %v193, 0.0
        %v199 = vadd.f32 %v197, %v198
        %200 = vadd.xlane.f32.xlu0 %v199
        %v201 = vpop.xlane.xlu0 %200
        %v202 = vmul.f32 %v201, 0.00390625
        %v203 = vld [vmem:[%s1] sm:$0xf]
        %v205 = vlaneseq
        %v206 = vand.u32 %v205, 127
        %v207 = vperm.slane %v202, %v206
        %vm208 = vcmask 31744
        %v209 = vsel %vm208, %v207, 0
        %v212 = vsel %vm196, %v203, 0
        %214 = vmatpush.msra.mxu0 0.0
        %215 = vmatpush.msra.mxu0 0.0
        %216 = vmatpush.msra.mxu0 0.0
        %217 = vmatpush.msra.mxu0 0.0
        %218 = vmatpush.msra.mxu0 0.0
        %219 = vmatpush.msra.mxu0 0.0
        %220 = vmatpush.msra.mxu0 0.0
        %221 = vmatpush.msra.mxu0 0.0
        %222 = vmatpush.msra.mxu0 0.0
        %223 = vmatpush.msra.mxu0 0.0
        %224 = vmatpush.msra.mxu0 0.0
        %225 = vmatpush.msra.mxu0 0.0
        %226 = vmatpush.msra.mxu0 0.0
        %227 = vmatpush.msra.mxu0 0.0
        %228 = vmatpush.msra.mxu0 0.0
        %229 = vmatpush.msra.mxu0 %v212
        %230 = vmatmul.f32.gmra.mxu0 %v209
        %v231 = vpop.f32.mrf.mxu0
        %v232 = vadd.f32 0.0, %v231
        %233 = vdwg.mxu0
        %v234 = vmax.f32 %v232, 0.0
        %v235 = vld [vmem:[%s2] sm:$0x1]
        %vm236 = vcmask 7168
        %v238 = vsel %vm236, %v234, 0
        %vm240 = vcmask 1040384
        %v242 = vsel %vm240, %v235, 0
        %244 = vmatpush.msra.mxu0 0.0
        %245 = vmatpush.msra.mxu0 0.0
        %246 = vmatpush.msra.mxu0 0.0
        %247 = vmatpush.msra.mxu0 0.0
        %248 = vmatpush.msra.mxu0 0.0
        %249 = vmatpush.msra.mxu0 0.0
        %250 = vmatpush.msra.mxu0 0.0
        %251 = vmatpush.msra.mxu0 0.0
        %252 = vmatpush.msra.mxu0 0.0
        %253 = vmatpush.msra.mxu0 0.0
        %254 = vmatpush.msra.mxu0 0.0
        %255 = vmatpush.msra.mxu0 0.0
        %256 = vmatpush.msra.mxu0 0.0
        %257 = vmatpush.msra.mxu0 0.0
        %258 = vmatpush.msra.mxu0 0.0
        %259 = vmatpush.msra.mxu0 %v242
        %260 = vmatmul.f32.gmra.mxu0 %v238
        %v261 = vpop.f32.mrf.mxu0
        %v262 = vadd.f32 0.0, %v261
        %263 = vdwg.mxu0
        %v264 = vxor.u32 %v262, 2147483648
        %v265 = vmul.f32 %v264, 1.442695
        %v266 = vpow.pop %v265
        %v267 = vadd.f32 %v266, 1.0
        %v268 = vrcp.pop %v267
        %v269 = vmul.f32 %v267, %v268
        %v270 = vsub.f32 1.0, %v269
        %v271 = vmul.f32 %v268, %v270
        %v272 = vadd.f32 %v268, %v271
        %vm273 = vweird.f32 %v267
        %vm274 = vweird.f32 %v268
        %vm275 = vmor %vm273, %vm274
        %v276 = vsel %vm275, %v268, %v272
        %v277 = vand.u32 2147483647, %v267
        %vm278 = vcmp.eq.f32.partialorder %v277, 8.507059e+37
        %v279 = vand.u32 %v267, 2147483648
        %v280 = vor.u32 1.1754944e-38, %v279
        %v281 = vsel %vm278, %v280, %v276
        %v282 = vmul.f32 1.0, %v281
        %v283 = vperm.slane %v282, 0
        %v284 = vlaneseq
        %v285 = vshrl.u32 %v284, 7
        %287 = vset.pattern.permute.xlu0 %v285
        %288 = vperm.xlu0 %287, %v283
        %v289 = vpop.permute.xlu0 %288
        %v292 = vunpack.c.l.s4 839922192
        %v293 = vunpack.c.0.s8 %v292
        %v294 = vperm.slane %v289, %v293
        %v296 = vmul.f32 %v189, %v294
        %297 = vst [vmem:[%s188] sm:$0xff] %v296
        %s298 = sand.u32 %s96, 1
        %s299 = scalar_lea.sflag [#allocation4], %s298
        %s300 = sand.u32 %s96, 1
        %s301 = smul.addr %s300, 8
        %s302 = scalar_lea.vmem [#allocation5], %s301
        // Predicated region
        $region37: #{tpu_custom_call.1} parent=31 // pred_check
          %p303 = pneg %p106
        $region38: #{tpu_custom_call.1} parent=31 // pred_check_branch
          %305 = sbr.rel (%p303) target = $region40
        $region39: #{tpu_custom_call.1} parent=31 // pred_region
          %307 = vsyncadd %s299, 0
          %s308 = smul.addr %s20, 2
          %s309 = smul.addr %s308, 4
          %s310 = scalar_lea.hbm %s3, %s309
          %s312 = sshll.u32 %s302, 4
          %s313 = int_to_ptr.vmem [resolvable:$true] %s312
          %s314 = sshll.u32 %s310, 4
          %s315 = int_to_ptr.hbm [resolvable:$true] %s314
          %317 = dma.vmem_to_hbm [thread:$0]  %s313, 128, %s315, %s299
        $region40: #{tpu_custom_call.1} parent=31 // pred_fallthru
          _
      $region32: #{tpu_custom_call.1} parent=5 // pred_fallthru
        _
      %p318 = scmp.le.s32.totalorder 2, %s15
      // Predicated region
      $region41: #{tpu_custom_call.1} parent=5 // pred_check
        %p319 = pneg %p318
      $region42: #{tpu_custom_call.1} parent=5 // pred_check_branch
        %321 = sbr.rel (%p319) target = $region44
      $region43: #{tpu_custom_call.1} parent=5 // pred_region
        %s322 = ssub.s32 %s15, 2
        // Predicated region
        $region45: #{tpu_custom_call.1} parent=43 // pred_check
          %p323 = pneg %p112
        $region46: #{tpu_custom_call.1} parent=43 // pred_check_branch
          %325 = sbr.rel (%p323) target = $region48
        $region47: #{tpu_custom_call.1} parent=43 // pred_region
          %s326 = sand.u32 %s97, 1
          %s327 = scalar_lea.sflag [#allocation4], %s326
          %s328 = sand.u32 %s97, 1
          %s329 = smul.addr %s328, 8
          %s330 = scalar_lea.vmem [#allocation5], %s329
          %332 = dma.done %s327, 128
        $region48: #{tpu_custom_call.1} parent=43 // pred_fallthru
          _
      $region44: #{tpu_custom_call.1} parent=5 // pred_fallthru
        _
    $region6: #{tpu_custom_call.1} parent=1 // loop_footer
      %s19 = sadd.s32 1, %s15
    $region7: #{tpu_custom_call.1} parent=1 // loop_footer_branch
      %14 = sbr.rel target = $region3
    $region8: #{tpu_custom_call.1} parent=1 // loop_exit
      _
    %333 = vsyncpa [#allocation3], 1
    %s334 = scalar_lea.sflag [#allocation3], 1
    %335 = vsyncpa %s334, 1
    %336 = vsyncpa [#allocation4], 1
    %s337 = scalar_lea.sflag [#allocation4], 1
    %338 = vsyncpa %s337, 1

</llo_original>
